<compile_context>
chip_gen: v5e
topology: v5e:2x2
jax: 0.10.0
libtpu: 0.0.40
codegen_flags: <defaults>
</compile_context>

<pallas_src>
import jax
import jax.numpy as jnp
from jax.experimental import pallas as pl
from jax.experimental.pallas import tpu as pltpu


def _round_up(v: int, m: int) -> int:
    return ((v + m - 1) // m) * m


def _kernel(x_ref, w_ref, o_ref):
    # x_ref: (tm, td) shared across samples; w_ref: (s_blk, 1, td);
    # o_ref: (s_blk, tm, td).  Pure elementwise scale (VPU only).
    x = x_ref[...]
    for s in range(o_ref.shape[0]):          # small static unroll over samples
        o_ref[s] = (x * w_ref[s]).astype(o_ref.dtype)


def bayesian_elementwise_linear_forward(x, weight_mu, weight_rho, eps,
                                        *, block_m: int = 256,
                                        block_d: int = 1024,
                                        block_s: int = 2):
    """
    x:          (n_data, d)
    weight_mu:  (d,)
    weight_rho: (d,)
    eps:        (n_samples, d)   reparametrization noise
    returns:    (n_samples, n_data, d)
    """
    n_data, d = x.shape
    n_samples = eps.shape[0]
    itemsize = jnp.dtype(x.dtype).itemsize

    # Grid-invariant, overflow-safe math hoisted out of the kernel:
    # reparametrized weight samples, shape (S, 1, d) so its block's
    # second-to-last dim (=1) equals the full dim.
    w = weight_mu[None, :] + jax.nn.softplus(weight_rho)[None, :] * eps
    w = w.astype(x.dtype).reshape(n_samples, 1, d)

    # dtype-aware sublane granularity: 8 for f32, 16 for bf16, 32 for int8.
    sublane = {4: 8, 2: 16, 1: 32}.get(itemsize, 8)
    bm = _round_up(max(block_m, sublane), sublane)
    bd = _round_up(max(block_d, 128), 128)
    tm = n_data if n_data <= bm else bm        # full-dim or multiple of sublane
    td = d if d <= bd else bd                  # full-dim or multiple of 128
    s_blk = min(max(block_s, 1), n_samples)

    grid = (pl.cdiv(n_data, tm), pl.cdiv(d, td), pl.cdiv(n_samples, s_blk))

    grid_spec = pltpu.PrefetchScalarGridSpec(
        num_scalar_prefetch=0,
        # Sample axis innermost: x's block index ignores it, so the x tile is
        # reused from VMEM across all sample-block iterations.
        grid=grid,
        in_specs=[
            pl.BlockSpec((tm, td), lambda m, n, s: (m, n)),          # x (shared)
            pl.BlockSpec((s_blk, 1, td), lambda m, n, s: (s, 0, n)), # w per-sample
        ],
        out_specs=pl.BlockSpec((s_blk, tm, td), lambda m, n, s: (s, m, n)),
    )

    out = pl.pallas_call(
        _kernel,
        out_shape=jax.ShapeDtypeStruct((n_samples, n_data, d), x.dtype),
        grid_spec=grid_spec,
        compiler_params=pltpu.CompilerParams(
            # Keep the sample axis un-sharded so both v7x TensorCores preserve
            # x-tile residency; m/n parallelism is ample for megacore.
            dimension_semantics=("parallel", "parallel", "arbitrary"),
            # For bigger tiles on v6e (e.g. 512x2048, s_blk=4), also pass
            # vmem_limit_bytes=64<<20 here; cap well under 64 MiB on v7x.
        ),
        cost_estimate=pl.CostEstimate(
            flops=n_samples * n_data * d,
            transcendentals=0,
            bytes_accessed=(n_data * d * itemsize            # x
                            + n_samples * d * itemsize       # w
                            + n_samples * n_data * d * itemsize),  # out
        ),
    )(x, w)
    return out


if __name__ == "__main__":
    # Small shapes consistent with the module: x is (n_data, input_output_size).
    input_output_size = 96          # non-multiple of 128 -> full-dim lane block
    n_data = 12                     # non-multiple of 8   -> full-dim sublane block
    n_samples = 4
    rho_scale = -4.0
    mu_scale = (6.0 / input_output_size) ** 0.5   # config.mu_scale default

    key = jax.random.PRNGKey(0)
    k_x, k_mu, k_eps = jax.random.split(key, 3)

    weight_mu = jax.random.uniform(
        k_mu, (input_output_size,), jnp.float32, -mu_scale, mu_scale)
    weight_rho = jnp.full((input_output_size,), rho_scale, jnp.float32)
    eps = jax.random.normal(
        k_eps, (n_samples, input_output_size), jnp.float32)
    x = jax.random.normal(k_x, (n_data, input_output_size), jnp.float32)

    # Pure-JAX reference replicating the torch forward literally
    # (diagonal matrix via eye + batched einsum).
    sigma = jax.nn.softplus(weight_rho)
    w_ref = weight_mu[None, :] + sigma[None, :] * eps                 # (S, d)
    w_diag = jnp.einsum("bj,jk->bjk", w_ref,
                        jnp.eye(input_output_size, dtype=w_ref.dtype))
    x_e = jnp.broadcast_to(x, (n_samples, n_data, input_output_size))
    ref = jnp.einsum("bij,bjk->bik", x_e, w_diag)

    # 1) Default tiling: blocks take the full (small) dims, samples blocked 2x.
    out = bayesian_elementwise_linear_forward(x, weight_mu, weight_rho, eps)
    out = jax.block_until_ready(out)
    assert out.shape == (n_samples, n_data, input_output_size)
    assert jnp.allclose(out, ref, atol=1e-5, rtol=1e-5)

    # 2) Forced small row-tile (tm=8 over n_data=12) to exercise the ragged
    #    boundary path (masked boundary-block writes, no padding/slicing).
    out2 = bayesian_elementwise_linear_forward(
        x, weight_mu, weight_rho, eps, block_m=8, block_d=128, block_s=2)
    out2 = jax.block_until_ready(out2)
    assert jnp.allclose(out2, ref, atol=1e-5, rtol=1e-5)

    print("KERNEL_OK")
</pallas_src>

<mosaic_0001>
module attributes {stable_mosaic.version = 11 : i64} {
  func.func @_kernel(%arg0: i32, %arg1: i32, %arg2: i32, %arg3: memref<12x96xf32, #tpu.memory_space<vmem>>, %arg4: memref<2x1x96xf32, #tpu.memory_space<vmem>>, %arg5: memref<2x12x96xf32, #tpu.memory_space<vmem>>) attributes {dimension_semantics = [#tpu.dimension_semantics<parallel>, #tpu.dimension_semantics<parallel>, #tpu.dimension_semantics<arbitrary>], iteration_bounds = array<i64: 1, 1, 2>, scalar_prefetch = 0 : i64, scratch_operands = 0 : i64, tpu.core_type = #tpu.core_type<tc>, window_params = [{transform_indices = @transform_0, window_bounds = array<i64: 12, 96>}, {transform_indices = @transform_1, window_bounds = array<i64: 2, 1, 96>}, {transform_indices = @transform_2, window_bounds = array<i64: 2, 12, 96>}]} {
    %c0 = arith.constant 0 : index
    %c0_0 = arith.constant 0 : index
    %0 = vector.load %arg3[%c0, %c0_0] : memref<12x96xf32, #tpu.memory_space<vmem>>, vector<12x96xf32>
    %c0_1 = arith.constant 0 : index
    %c0_2 = arith.constant 0 : index
    %c0_3 = arith.constant 0 : index
    %1 = vector.load %arg4[%c0_1, %c0_2, %c0_3] : memref<2x1x96xf32, #tpu.memory_space<vmem>>, vector<1x1x96xf32>
    %2 = vector.shape_cast %1 : vector<1x1x96xf32> to vector<1x96xf32>
    %3 = vector.broadcast %2 : vector<1x96xf32> to vector<12x96xf32>
    %4 = arith.mulf %0, %3 : vector<12x96xf32>
    %c0_4 = arith.constant 0 : index
    %c0_5 = arith.constant 0 : index
    %c0_6 = arith.constant 0 : index
    %5 = vector.load %arg5[%c0_4, %c0_5, %c0_6] : memref<2x12x96xf32, #tpu.memory_space<vmem>>, vector<1x12x96xf32>
    %6 = vector.shape_cast %5 : vector<1x12x96xf32> to vector<12x96xf32>
    %7 = vector.shape_cast %4 : vector<12x96xf32> to vector<1x12x96xf32>
    tpu.vector_store %arg5[%c0_4, %c0_5, %c0_6], %7 {strides = array<i32>} : memref<2x12x96xf32, #tpu.memory_space<vmem>>, vector<1x12x96xf32>,
    %c1 = arith.constant 1 : index
    %c0_7 = arith.constant 0 : index
    %c0_8 = arith.constant 0 : index
    %8 = vector.load %arg4[%c1, %c0_7, %c0_8] : memref<2x1x96xf32, #tpu.memory_space<vmem>>, vector<1x1x96xf32>
    %9 = vector.shape_cast %8 : vector<1x1x96xf32> to vector<1x96xf32>
    %10 = vector.broadcast %9 : vector<1x96xf32> to vector<12x96xf32>
    %11 = arith.mulf %0, %10 : vector<12x96xf32>
    %c1_9 = arith.constant 1 : index
    %c0_10 = arith.constant 0 : index
    %c0_11 = arith.constant 0 : index
    %12 = vector.load %arg5[%c1_9, %c0_10, %c0_11] : memref<2x12x96xf32, #tpu.memory_space<vmem>>, vector<1x12x96xf32>
    %13 = vector.shape_cast %12 : vector<1x12x96xf32> to vector<12x96xf32>
    %14 = vector.shape_cast %11 : vector<12x96xf32> to vector<1x12x96xf32>
    tpu.vector_store %arg5[%c1_9, %c0_10, %c0_11], %14 {strides = array<i32>} : memref<2x12x96xf32, #tpu.memory_space<vmem>>, vector<1x12x96xf32>,
    return
  }
  func.func @transform_0(%arg0: i32, %arg1: i32, %arg2: i32) -> (i32, i32) {
    %c0_i32 = arith.constant 0 : i32
    return %arg0, %arg1 : i32, i32
  }
  func.func @transform_1(%arg0: i32, %arg1: i32, %arg2: i32) -> (i32, i32, i32) {
    %c0_i32 = arith.constant 0 : i32
    %c0_i32_0 = arith.constant 0 : i32
    return %arg2, %c0_i32, %arg1 : i32, i32, i32
  }
  func.func @transform_2(%arg0: i32, %arg1: i32, %arg2: i32) -> (i32, i32, i32) {
    %c0_i32 = arith.constant 0 : i32
    return %arg2, %arg0, %arg1 : i32, i32, i32
  }
}

</mosaic_0001>

<llo_original>
// kernel: tpu_custom_call.1
$region0: #{tpu_custom_call.1}
  #allocation0 [shape = 'u32[]', space=smem, size = 0x4, offset = 0x4, fixed_abs, tag = 'smem constant byte address 0x4 - core index']
  #allocation1 [shape = 'u32[72,128]{1,0:T(1,128)}', space=vmem, size = 0x9000, scoped, tag = 'internal scratch']
  %s0 = inlined_call_operand.hbm [shape: f32[12,96], index: 0, kind: input, shape index: {}]
  %s1 = inlined_call_operand.hbm [shape: f32[4,1,96], index: 1, kind: input, shape index: {}]
  %s2 = inlined_call_operand.vmem [shape: f32[4,12,96], index: 2, kind: output, shape index: {}]
  %s3 = sld [smem:[#allocation0]]
  $region49: #{tpu_custom_call.1} parent=0
    _
  %s5 = ssub.s32 1, %s3
  %s6 = scalar_select 0, %s5, %s3
  $region1: #{tpu_custom_call.1} parent=0
    #allocation2 [shape = 'u8[8192]{0}', space=vmem, size = 0x2000, scoped, tag = 'input window, operand 0, single buffered']
    #allocation3 [shape = 's32[2]{0}', space=sflag, size = 0x8, scoped, tag = 'scoped memory for tpu_custom_call.1']
    #allocation4 [shape = 'u8[2048]{0}', space=vmem, size = 0x800, scoped, tag = 'input window, operand 1']
    #allocation5 [shape = 's32[2]{0}', space=sflag, size = 0x8, scoped, tag = 'scoped memory for tpu_custom_call.1']
    %7 = vsyncpa [#allocation3], 0
    %8 = vsyncpa [#allocation5], 0
    %s9 = scalar_lea.sflag [#allocation5], 1
    %10 = vsyncpa %s9, 0
    loop: start=0, step=1, limit=4
    $region2: #{tpu_custom_call.1} parent=1 // loop_pre_header
      _
    $region3: #{tpu_custom_call.1} parent=1 // loop_header
      %s12 = sphi 0, %s16
      %p13 = scmp.ge.s32.totalorder %s12, 4
      %s19 = sphi 0, %s38
      %s20 = sphi 0, %s34
      %s21 = sphi 0, %s30
      %s22 = sphi 0, %s19
      %s23 = sphi 0, %s20
      %s24 = sphi 0, %s21
      %s25 = sphi 0, %s22
      %s26 = sphi 0, %s23
      %s27 = sphi 0, %s24
      %s43 = sphi 0, %s45
      %s46 = sphi 0, %s43
      %s47 = sphi 0, %s46
      %s63 = sphi 0, %s47
      %s71 = sphi 0, %s73
      %s74 = sphi 0, %s71
      %s75 = sphi 0, %s74
      %s91 = sphi 0, %s75
      %s101 = sphi 0, %s103
      %s104 = sphi 0, %s101
      %s105 = sphi 0, %s104
      %s121 = sphi 0, %s105
    $region4: #{tpu_custom_call.1} parent=1 // loop_header_branch
      %15 = sbr.rel (%p13) target = $region8
    $region5: #{tpu_custom_call.1} parent=1 // loop_body
      %s17 = ssub.s32 %s12, 1
      %s18 = ssub.s32 %s12, 2
      %s28 = sadd.s32 1, %s21
      %p29 = scmp.ge.s32.totalorder %s28, 2
      %s30 = scalar_select %p29, 0, %s28
      %s31 = sadd.s32 1, %s20
      %s32 = scalar_select %p29, %s31, %s20
      %p33 = scmp.ge.s32.totalorder %s32, 1
      %s34 = scalar_select %p33, 0, %s32
      %s35 = sadd.s32 1, %s19
      %s36 = scalar_select %p33, %s35, %s19
      %p37 = scmp.ge.s32.totalorder %s36, 1
      %s38 = scalar_select %p37, 0, %s36
      %s39 = ssub.s32 %s19, %s38
      %s40 = ssub.s32 %s20, %s34
      %s41 = sor.u32 %s39, %s40
      %p42 = scmp.eq.s32.totalorder %s41, 0
      %s44 = sadd.s32 %s43, 1
      %s45 = scalar_select %p42, %s43, %s44
      %p48 = pneg %p42
      %p49 = scmp.eq.s32.totalorder %s12, 1
      %p50 = por %p48, %p49
      %p51 = scmp.ne.s32.totalorder %s43, %s46
      %p52 = scmp.eq.s32.totalorder %s12, 0
      %p53 = por %p51, %p52
      %p54 = scmp.ne.s32.totalorder %s43, %s46
      %p55 = scmp.eq.s32.totalorder %s17, 1
      %p56 = por %p54, %p55
      %p57 = scmp.ne.s32.totalorder %s46, %s47
      %p58 = scmp.eq.s32.totalorder %s17, 0
      %p59 = por %p57, %p58
      %p60 = scmp.ne.s32.totalorder %s46, %s47
      %p61 = scmp.eq.s32.totalorder %s18, 1
      %p62 = por %p60, %p61
      %p64 = scmp.ne.s32.totalorder %s47, %s63
      %p65 = scmp.eq.s32.totalorder %s18, 0
      %p66 = por %p64, %p65
      %s67 = ssub.s32 %s21, %s30
      %s68 = ssub.s32 %s20, %s34
      %s69 = sor.u32 %s67, %s68
      %p70 = scmp.eq.s32.totalorder %s69, 0
      %s72 = sadd.s32 %s71, 1
      %s73 = scalar_select %p70, %s71, %s72
      %p76 = pneg %p70
      %p77 = scmp.eq.s32.totalorder %s12, 1
      %p78 = por %p76, %p77
      %p79 = scmp.ne.s32.totalorder %s71, %s74
      %p80 = scmp.eq.s32.totalorder %s12, 0
      %p81 = por %p79, %p80
      %p82 = scmp.ne.s32.totalorder %s71, %s74
      %p83 = scmp.eq.s32.totalorder %s17, 1
      %p84 = por %p82, %p83
      %p85 = scmp.ne.s32.totalorder %s74, %s75
      %p86 = scmp.eq.s32.totalorder %s17, 0
      %p87 = por %p85, %p86
      %p88 = scmp.ne.s32.totalorder %s74, %s75
      %p89 = scmp.eq.s32.totalorder %s18, 1
      %p90 = por %p88, %p89
      %p92 = scmp.ne.s32.totalorder %s75, %s91
      %p93 = scmp.eq.s32.totalorder %s18, 0
      %p94 = por %p92, %p93
      %s95 = ssub.s32 %s21, %s30
      %s96 = ssub.s32 %s19, %s38
      %s97 = sor.u32 %s95, %s96
      %s98 = ssub.s32 %s20, %s34
      %s99 = sor.u32 %s97, %s98
      %p100 = scmp.eq.s32.totalorder %s99, 0
      %s102 = sadd.s32 %s101, 1
      %s103 = scalar_select %p100, %s101, %s102
      %p106 = pneg %p100
      %p107 = scmp.eq.s32.totalorder %s12, 1
      %p108 = por %p106, %p107
      %p109 = scmp.ne.s32.totalorder %s101, %s104
      %p110 = scmp.eq.s32.totalorder %s12, 0
      %p111 = por %p109, %p110
      %p112 = scmp.ne.s32.totalorder %s101, %s104
      %p113 = scmp.eq.s32.totalorder %s17, 1
      %p114 = por %p112, %p113
      %p115 = scmp.ne.s32.totalorder %s104, %s105
      %p116 = scmp.eq.s32.totalorder %s17, 0
      %p117 = por %p115, %p116
      %p118 = scmp.ne.s32.totalorder %s104, %s105
      %p119 = scmp.eq.s32.totalorder %s18, 1
      %p120 = por %p118, %p119
      %p122 = scmp.ne.s32.totalorder %s105, %s121
      %p123 = scmp.eq.s32.totalorder %s18, 0
      %p124 = por %p122, %p123
      %p125 = scmp.le.s32.totalorder 1, %s12
      %p126 = scmp.lt.s32.totalorder %s12, 3
      %p127 = pnand %p125, %p126
      %p128 = pneg %p127
      // Predicated region
      $region9: #{tpu_custom_call.1} parent=5 // pred_check
        _
      $region10: #{tpu_custom_call.1} parent=5 // pred_check_branch
        %130 = sbr.rel (%p127) target = $region12
      $region11: #{tpu_custom_call.1} parent=5 // pred_region
        %s131 = ssub.s32 %s12, 1
        // Predicated region
        $region13: #{tpu_custom_call.1} parent=11 // pred_check
          %p132 = pneg %p59
        $region14: #{tpu_custom_call.1} parent=11 // pred_check_branch
          %134 = sbr.rel (%p132) target = $region16
        $region15: #{tpu_custom_call.1} parent=11 // pred_region
          %s135 = smul.u32 2, %s22
          %137 = vsyncadd [#allocation3], 0
          %s138 = sadd.s32 %s23, %s135
          %s139 = smul.addr %s138, 8
          %s140 = scalar_lea.hbm %s0, %s139
          %s141 = sshll.u32 %s140, 4
          %s142 = int_to_ptr.hbm [resolvable:$true] %s141
          %s143 = sshll.u32 [#allocation2], 4
          %s144 = int_to_ptr.vmem [resolvable:$true] %s143
          %149 = dma.hbm_to_vmem [thread:$0]  %s142, 256, %s144, [#allocation3], 128, 128, 8
        $region16: #{tpu_custom_call.1} parent=11 // pred_fallthru
          _
      $region12: #{tpu_custom_call.1} parent=5 // pred_fallthru
        _
      %p150 = scmp.lt.s32.totalorder %s12, 2
      // Predicated region
      $region17: #{tpu_custom_call.1} parent=5 // pred_check
        %p151 = pneg %p150
      $region18: #{tpu_custom_call.1} parent=5 // pred_check_branch
        %153 = sbr.rel (%p151) target = $region20
      $region19: #{tpu_custom_call.1} parent=5 // pred_region
        // Predicated region
        $region21: #{tpu_custom_call.1} parent=19 // pred_check
          %p154 = pneg %p81
        $region22: #{tpu_custom_call.1} parent=19 // pred_check_branch
          %156 = sbr.rel (%p154) target = $region24
        $region23: #{tpu_custom_call.1} parent=19 // pred_region
          %s157 = sand.u32 %s71, 1
          %s158 = scalar_lea.sflag [#allocation5], %s157
          %s159 = sand.u32 %s71, 1
          %s160 = smul.addr %s159, 2
          %s161 = scalar_lea.vmem [#allocation4], %s160
          %s162 = smul.u32 2, %s21
          %164 = vsyncadd %s158, 0
          %s165 = sadd.s32 %s20, %s162
          %s166 = scalar_lea.hbm %s1, %s165
          %s167 = sshll.u32 %s166, 4
          %s168 = int_to_ptr.hbm [resolvable:$true] %s167
          %s169 = sshll.u32 %s161, 4
          %s170 = int_to_ptr.vmem [resolvable:$true] %s169
          %175 = dma.hbm_to_vmem [thread:$0]  %s168, 32, %s170, %s158, 16, 16, 1
        $region24: #{tpu_custom_call.1} parent=19 // pred_fallthru
          _
      $region20: #{tpu_custom_call.1} parent=5 // pred_fallthru
        _
      %p176 = scmp.le.s32.totalorder 1, %s12
      %p177 = scmp.lt.s32.totalorder %s12, 3
      %p178 = pnand %p176, %p177
      %p179 = pneg %p178
      // Predicated region
      $region25: #{tpu_custom_call.1} parent=5 // pred_check
        _
      $region26: #{tpu_custom_call.1} parent=5 // pred_check_branch
        %181 = sbr.rel (%p178) target = $region28
      $region27: #{tpu_custom_call.1} parent=5 // pred_region
        %s182 = ssub.s32 %s12, 1
        // Predicated region
        $region29: #{tpu_custom_call.1} parent=27 // pred_check
          %p183 = pneg %p59
        $region30: #{tpu_custom_call.1} parent=27 // pred_check_branch
          %185 = sbr.rel (%p183) target = $region32
        $region31: #{tpu_custom_call.1} parent=27 // pred_region
          %187 = dma.done [#allocation3], 256
        $region32: #{tpu_custom_call.1} parent=27 // pred_fallthru
          _
        %s188 = sand.u32 %s74, 1
        %s189 = scalar_lea.sflag [#allocation5], %s188
        %s190 = sand.u32 %s74, 1
        %s191 = smul.addr %s190, 2
        %s192 = scalar_lea.vmem [#allocation4], %s191
        // Predicated region
        $region33: #{tpu_custom_call.1} parent=27 // pred_check
          %p193 = pneg %p87
        $region34: #{tpu_custom_call.1} parent=27 // pred_check_branch
          %195 = sbr.rel (%p193) target = $region36
        $region35: #{tpu_custom_call.1} parent=27 // pred_region
          %197 = dma.done %s189, 32
        $region36: #{tpu_custom_call.1} parent=27 // pred_fallthru
          _
        %p198 = pneg %p59
        %p199 = pneg %p56
        %s200 = sand.u32 %s74, 1
        %s201 = scalar_lea.sflag [#allocation5], %s200
        %s202 = sand.u32 %s74, 1
        %s203 = smul.addr %s202, 2
        %s204 = scalar_lea.vmem [#allocation4], %s203
        %p205 = pneg %p87
        %p206 = pneg %p84
        %p207 = pneg %p117
        %p208 = pneg %p114
        %s209 = smul.u32 2, %s24
        %s210 = smul.u32 2, %s22
        %p211 = scmp.lt.s32.totalorder %s209, 3
        %s212 = scalar_select %p211, %s209, 3
        %p213 = scmp.lt.s32.totalorder %s210, 1
        %s214 = scalar_select %p213, %s210, 1
        %p215 = scmp.lt.s32.totalorder %s23, 0
        %s216 = scalar_select %p215, %s23, 0
        %s217 = sadd.s32 %s216, %s214
        %s218 = smul.addr %s212, 2
        %s219 = sadd.s32 %s217, %s218
        %s220 = smul.addr %s219, 8
        %s221 = scalar_lea.vmem %s2, %s220
        %s222 = smul.u32 2, %s22
        %s223 = smul.u32 2, %s24
        %s224 = smul.u32 2, %s24
        %s225 = smul.u32 2, %s22
        %p226 = scmp.lt.s32.totalorder %s224, 3
        %s227 = scalar_select %p226, %s224, 3
        %p228 = scmp.lt.s32.totalorder %s225, 1
        %s229 = scalar_select %p228, %s225, 1
        %p230 = scmp.lt.s32.totalorder %s23, 0
        %s231 = scalar_select %p230, %s23, 0
        %s232 = sadd.s32 %s231, %s229
        %s233 = smul.addr %s227, 2
        %s234 = sadd.s32 %s232, %s233
        %s235 = smul.addr %s234, 8
        %s236 = scalar_lea.vmem %s2, %s235
        %s237 = smul.u32 2, %s24
        %s238 = smul.u32 2, %s22
        %v239 = vld [vmem:[#allocation2] sm:$0xff]
        %v240 = vld [vmem:[#allocation2 + $0x8] sm:$0xf]
        %v241 = vld [vmem:[%s192] sm:$0x1]
        %v243 = vperm.slane %v241, 0
        %v245 = vmul.f32 %v239, %v243
        %v246 = vmul.f32 %v240, %v243
        %vm247 = vcmask 785408
        %248 = vst.msk [vmem:[%s236] sm:$0xff] %vm247, %v245
        %vm249 = vcmask 781312
        %250 = vst.msk [vmem:[%s236 + $0x8] sm:$0xf] %vm249, %v246
        %s251 = scalar_lea.vmem %s192, 1 [#allocation4]
        %v252 = vld [vmem:[%s251] sm:$0x1]
        %v254 = vperm.slane %v252, 0
        %v256 = vmul.f32 %v239, %v254
        %v257 = vmul.f32 %v240, %v254
        %s258 = scalar_lea.vmem %s236, 16
        %259 = vst.msk [vmem:[%s258] sm:$0xff] %vm247, %v256
        %260 = vst.msk [vmem:[%s258 + $0x8] sm:$0xf] %vm249, %v257
        %s261 = smul.u32 2, %s24
        %s262 = smul.u32 2, %s22
        %p263 = scmp.lt.s32.totalorder %s261, 3
        %s264 = scalar_select %p263, %s261, 3
        %p265 = scmp.lt.s32.totalorder %s262, 1
        %s266 = scalar_select %p265, %s262, 1
        %p267 = scmp.lt.s32.totalorder %s23, 0
        %s268 = scalar_select %p267, %s23, 0
        %s269 = sadd.s32 %s268, %s266
        %s270 = smul.addr %s264, 2
        %s271 = sadd.s32 %s269, %s270
        %s272 = smul.addr %s271, 8
        %s273 = scalar_lea.vmem %s2, %s272
        // Predicated region
        $region37: #{tpu_custom_call.1} parent=27 // pred_check
          %p274 = pneg %p114
        $region38: #{tpu_custom_call.1} parent=27 // pred_check_branch
          %276 = sbr.rel (%p274) target = $region40
        $region39: #{tpu_custom_call.1} parent=27 // pred_region
          %s277 = smul.u32 2, %s24
          %s278 = smul.u32 2, %s22
        $region40: #{tpu_custom_call.1} parent=27 // pred_fallthru
          _
      $region28: #{tpu_custom_call.1} parent=5 // pred_fallthru
        _
      %p279 = scmp.le.s32.totalorder 2, %s12
      // Predicated region
      $region41: #{tpu_custom_call.1} parent=5 // pred_check
        %p280 = pneg %p279
      $region42: #{tpu_custom_call.1} parent=5 // pred_check_branch
        %282 = sbr.rel (%p280) target = $region44
      $region43: #{tpu_custom_call.1} parent=5 // pred_region
        %s283 = ssub.s32 %s12, 2
        // Predicated region
        $region45: #{tpu_custom_call.1} parent=43 // pred_check
          %p284 = pneg %p120
        $region46: #{tpu_custom_call.1} parent=43 // pred_check_branch
          %286 = sbr.rel (%p284) target = $region48
        $region47: #{tpu_custom_call.1} parent=43 // pred_region
          %s287 = smul.u32 2, %s27
          %s288 = smul.u32 2, %s25
          %p289 = scmp.lt.s32.totalorder %s287, 3
          %s290 = scalar_select %p289, %s287, 3
          %p291 = scmp.lt.s32.totalorder %s288, 1
          %s292 = scalar_select %p291, %s288, 1
          %p293 = scmp.lt.s32.totalorder %s26, 0
          %s294 = scalar_select %p293, %s26, 0
          %s295 = sadd.s32 %s294, %s292
          %s296 = smul.addr %s290, 2
          %s297 = sadd.s32 %s295, %s296
          %s298 = smul.addr %s297, 8
          %s299 = scalar_lea.vmem %s2, %s298
        $region48: #{tpu_custom_call.1} parent=43 // pred_fallthru
          _
      $region44: #{tpu_custom_call.1} parent=5 // pred_fallthru
        _
    $region6: #{tpu_custom_call.1} parent=1 // loop_footer
      %s16 = sadd.s32 1, %s12
    $region7: #{tpu_custom_call.1} parent=1 // loop_footer_branch
      %11 = sbr.rel target = $region3
    $region8: #{tpu_custom_call.1} parent=1 // loop_exit
      _
    %300 = vsyncpa [#allocation3], 1
    %s301 = scalar_lea.sflag [#allocation3], 1
    %302 = vsyncpa %s301, 1
    %303 = vsyncpa [#allocation5], 1
    %s304 = scalar_lea.sflag [#allocation5], 1
    %305 = vsyncpa %s304, 1

</llo_original>
